<compile_context>
chip_gen: v5e
topology: v5e:2x2
jax: 0.10.0
libtpu: 0.0.40
codegen_flags: <defaults>
</compile_context>

<pallas_src>
import math

import jax
import jax.numpy as jnp
from jax.experimental import pallas as pl
from jax.experimental.pallas import tpu as pltpu

# ---------------- config (small, consistent with the module) ----------------
BATCH = 2
SEQ = 8
HIDDEN = 32
NUM_HEADS = 4
HEAD_DIM = HIDDEN // NUM_HEADS
LN_EPS = 1e-5
BS = BATCH * SEQ  # flattened row count

# Row layout of the packed vector slab (16, HIDDEN), f32:
#   0: bq (pre-scaled)   1: bk    2: bv    3: bo    4: b1    5: b2
#   6: ln1_g  7: ln1_b   8: ln2_g 9: ln2_b
#   10..13: per-head 0/1 lane masks     14..15: zero padding
# Row layout of the packed weight slab (6*HIDDEN, HIDDEN), bf16:
#   [wq_scaled; wk; wv; wo; w1; w2]


def _layer_norm(y, gamma, beta):
    # PyTorch LayerNorm: biased variance over last dim, eps inside sqrt.  f32 throughout.
    mean = jnp.mean(y, axis=-1, keepdims=True)
    var = jnp.mean((y - mean) ** 2, axis=-1, keepdims=True)
    inv = jax.lax.rsqrt(var + LN_EPS)
    return (y - mean) * inv * gamma + beta


def transformer_block_kernel(
    x_ref,      # (BS, H)        f32 flattened activations
    w_ref,      # (6H, H)        bf16 weight slab [wq*scale; wk; wv; wo; w1; w2]
    vec_ref,    # (16, H)        f32 bias/gamma/beta/head-mask slab
    amask_ref,  # (BS, BS)       f32 additive block-diagonal attention mask (0 / -1e30)
    o_ref,      # (BS, H)        f32 output
):
    H = HIDDEN
    x = x_ref[...]                              # f32, kept for residuals / LayerNorm
    x_bf = x.astype(jnp.bfloat16)

    # ----- q/k/v projections: three lane-dense K=32 matmuls (no lane slicing anywhere) --
    q = jnp.dot(x_bf, w_ref[0:H, :], preferred_element_type=jnp.float32) + vec_ref[0:1, :]
    k = jnp.dot(x_bf, w_ref[H:2 * H, :], preferred_element_type=jnp.float32) + vec_ref[1:2, :]
    v = jnp.dot(x_bf, w_ref[2 * H:3 * H, :], preferred_element_type=jnp.float32) + vec_ref[2:3, :]
    k_bf = k.astype(jnp.bfloat16)
    v_bf = v.astype(jnp.bfloat16)

    amask = amask_ref[...]                      # additive mask, precomputed in wrapper

    # ----- per-head attention with full-width masked operands (no XLU lane shuffles) ----
    def head(h):
        lane_mask = vec_ref[10 + h:11 + h, :]                         # (1, H) 0/1 f32
        qm = (q * lane_mask).astype(jnp.bfloat16)                     # zero outside head h
        s = jax.lax.dot_general(qm, k_bf, (((1,), (1,)), ((), ())),
                                preferred_element_type=jnp.float32)   # (BS, BS)
        s = s + amask
        m = jnp.max(s, axis=-1, keepdims=True)
        p = jnp.exp(s - m)
        p = p * pl.reciprocal(jnp.sum(p, axis=-1, keepdims=True), approx=True)
        o_full = jnp.dot(p.astype(jnp.bfloat16), v_bf,
                         preferred_element_type=jnp.float32)          # (BS, H)
        return o_full * lane_mask                                     # keep head-h lanes

    # 2-way tree accumulation (shorter MRF-pop -> add dependency chain on v5e/v6e)
    o01 = head(0) + head(1)
    o23 = head(2) + head(3)
    attn_o = o01 + o23                                                # (BS, H) merged heads

    # ----- single output projection: one K=32 MXU push -----
    attn = jnp.dot(attn_o.astype(jnp.bfloat16), w_ref[3 * H:4 * H, :],
                   preferred_element_type=jnp.float32) + vec_ref[3:4, :]

    # ----- residual + layer norm 1 (f32) -----
    y = _layer_norm(attn + x, vec_ref[6:7, :], vec_ref[7:8, :])

    # ----- feed forward: Linear -> ReLU -> Linear -----
    h1 = jnp.dot(y.astype(jnp.bfloat16), w_ref[4 * H:5 * H, :],
                 preferred_element_type=jnp.float32) + vec_ref[4:5, :]
    h1 = jnp.maximum(h1, 0.0)
    h2 = jnp.dot(h1.astype(jnp.bfloat16), w_ref[5 * H:6 * H, :],
                 preferred_element_type=jnp.float32) + vec_ref[5:6, :]

    # ----- residual + layer norm 2 (f32) -----
    o_ref[...] = _layer_norm(h2 + y, vec_ref[8:9, :], vec_ref[9:10, :]).astype(o_ref.dtype)


def transformer_block(x, params):
    """x: (B, S, H) float32. params: dict of weights already in (in, out) layout."""
    B, S, H = x.shape
    bs = B * S
    x2 = x.reshape(bs, H)
    scale = 1.0 / math.sqrt(HEAD_DIM)

    # --- one-time wrapper-side packing ---
    # Weight slab: fold attention scale into wq; cast once to bf16 (MXU-native).
    wslab = jnp.concatenate(
        [params["wq"] * scale, params["wk"], params["wv"],
         params["wo"], params["w1"], params["w2"]], axis=0).astype(jnp.bfloat16)   # (6H, H)

    # Per-head 0/1 lane masks (row h selects lanes of head h).
    lane_head = jax.lax.broadcasted_iota(jnp.int32, (NUM_HEADS, H), 1) // HEAD_DIM
    head_row = jax.lax.broadcasted_iota(jnp.int32, (NUM_HEADS, H), 0)
    head_masks = (lane_head == head_row).astype(jnp.float32)                       # (4, H)

    vecs = jnp.concatenate(
        [params["bq"] * scale, params["bk"], params["bv"], params["bo"],
         params["b1"], params["b2"],
         params["ln1_g"], params["ln1_b"], params["ln2_g"], params["ln2_b"],
         head_masks, jnp.zeros((2, H), jnp.float32)], axis=0)                      # (16, H)

    # Block-diagonal additive mask: rows attend only within their own batch element.
    rb = jax.lax.broadcasted_iota(jnp.int32, (bs, bs), 0) // S
    cb = jax.lax.broadcasted_iota(jnp.int32, (bs, bs), 1) // S
    attn_mask = jnp.where(rb == cb, 0.0, -1e30).astype(jnp.float32)                # (bs, bs)

    args = (x2, wslab, vecs, attn_mask)

    out = pl.pallas_call(
        transformer_block_kernel,
        out_shape=jax.ShapeDtypeStruct((bs, H), x.dtype),
        # single invocation (no grid): every operand is one whole-array VMEM block
        in_specs=[pl.BlockSpec(memory_space=pltpu.MemorySpace.VMEM) for _ in args],
        out_specs=pl.BlockSpec(memory_space=pltpu.MemorySpace.VMEM),
    )(*args)
    return out.reshape(B, S, H)


def init_params(key, hidden):
    """Deterministic synthetic parameters with the same shapes as the PyTorch module.
    PyTorch stores Linear / in_proj weights as (out, in); we transpose to (in, out)."""
    ks = jax.random.split(key, 12)
    H = hidden
    scale = 1.0 / math.sqrt(H)

    def mat(k):  # (out, in) -> transpose -> (in, out)
        return (jax.random.uniform(k, (H, H), jnp.float32, -scale, scale)).T

    def vec(k):
        return jax.random.uniform(k, (1, H), jnp.float32, -scale, scale)

    params = dict(
        # nn.MultiheadAttention in_proj_weight (3H, H) split into q/k/v, in_proj_bias (3H,)
        wq=mat(ks[0]), wk=mat(ks[1]), wv=mat(ks[2]),
        bq=vec(ks[3]), bk=vec(ks[4]), bv=vec(ks[5]),
        # out_proj: Linear(H, H)
        wo=mat(ks[6]), bo=vec(ks[7]),
        # layer_norm1
        ln1_g=jnp.ones((1, H), jnp.float32), ln1_b=jnp.zeros((1, H), jnp.float32),
        # ff: Linear(H,H), ReLU, Linear(H,H)
        w1=mat(ks[8]), b1=vec(ks[9]),
        w2=mat(ks[10]), b2=vec(ks[11]),
        # layer_norm2
        ln2_g=jnp.ones((1, H), jnp.float32), ln2_b=jnp.zeros((1, H), jnp.float32),
    )
    return params


def reference_forward(x, p):
    """Pure-JAX f32 reference of the PyTorch forward (eval mode)."""
    q = x @ p["wq"] + p["bq"]
    k = x @ p["wk"] + p["bk"]
    v = x @ p["wv"] + p["bv"]
    B, S, H = x.shape
    qh = q.reshape(B, S, NUM_HEADS, HEAD_DIM).transpose(0, 2, 1, 3) / math.sqrt(HEAD_DIM)
    kh = k.reshape(B, S, NUM_HEADS, HEAD_DIM).transpose(0, 2, 1, 3)
    vh = v.reshape(B, S, NUM_HEADS, HEAD_DIM).transpose(0, 2, 1, 3)
    s = jnp.einsum("bhqd,bhkd->bhqk", qh, kh)
    a = jax.nn.softmax(s, axis=-1)
    o = jnp.einsum("bhqk,bhkd->bhqd", a, vh).transpose(0, 2, 1, 3).reshape(B, S, H)
    o = o @ p["wo"] + p["bo"]

    def ln(y, g, b):
        m = y.mean(-1, keepdims=True)
        var = ((y - m) ** 2).mean(-1, keepdims=True)
        return (y - m) / jnp.sqrt(var + LN_EPS) * g + b

    y = ln(o + x, p["ln1_g"], p["ln1_b"])
    h = jnp.maximum(y @ p["w1"] + p["b1"], 0.0) @ p["w2"] + p["b2"]
    return ln(h + y, p["ln2_g"], p["ln2_b"])


if __name__ == "__main__":
    key = jax.random.PRNGKey(0)
    kx, kp = jax.random.split(key)
    x = jax.random.normal(kx, (BATCH, SEQ, HIDDEN), dtype=jnp.float32)
    params = init_params(kp, HIDDEN)

    out = transformer_block(x, params)
    out = jax.block_until_ready(out)

    ref = reference_forward(x, params)
    assert out.shape == (BATCH, SEQ, HIDDEN)
    # Tolerance accounts for bf16 MXU operands (f32 accumulation) and the EUP
    # approximate reciprocal in the softmax denominator; LN/softmax stats stay f32.
    assert jnp.allclose(out, ref, atol=7.5e-2, rtol=7.5e-2), float(jnp.abs(out - ref).max())
    print("KERNEL_OK")
</pallas_src>

<mosaic_0001>
module attributes {stable_mosaic.version = 11 : i64} {
  func.func @transformer_block_kernel(%arg0: memref<16x32xf32, #tpu.memory_space<vmem>>, %arg1: memref<192x32xbf16, #tpu.memory_space<vmem>>, %arg2: memref<16x32xf32, #tpu.memory_space<vmem>>, %arg3: memref<16x16xf32, #tpu.memory_space<vmem>>, %arg4: memref<16x32xf32, #tpu.memory_space<vmem>>) attributes {dimension_semantics = [], scalar_prefetch = 0 : i64, scratch_operands = 0 : i64, tpu.core_type = #tpu.core_type<tc>} {
    %c0 = arith.constant 0 : index
    %c0_0 = arith.constant 0 : index
    %0 = vector.load %arg0[%c0, %c0_0] : memref<16x32xf32, #tpu.memory_space<vmem>>, vector<16x32xf32>
    %1 = arith.truncf %0 : vector<16x32xf32> to vector<16x32xbf16>
    %c0_1 = arith.constant 0 : index
    %c0_2 = arith.constant 0 : index
    %2 = vector.load %arg1[%c0_1, %c0_2] : memref<192x32xbf16, #tpu.memory_space<vmem>>, vector<32x32xbf16>
    %cst = arith.constant dense<0.000000e+00> : vector<16x32xf32>
    %3 = tpu.matmul %1, %2, %cst {dimension_numbers = #tpu.dot_dimension_numbers<[1], [0], [0], [1], [0, 0, 1, 1], [], []>} : vector<16x32xbf16>, vector<32x32xbf16>, vector<16x32xf32> -> vector<16x32xf32>
    %c0_3 = arith.constant 0 : index
    %c0_4 = arith.constant 0 : index
    %4 = vector.load %arg2[%c0_3, %c0_4] : memref<16x32xf32, #tpu.memory_space<vmem>>, vector<1x32xf32>
    %5 = vector.broadcast %4 : vector<1x32xf32> to vector<16x32xf32>
    %6 = arith.addf %3, %5 : vector<16x32xf32>
    %c32 = arith.constant 32 : index
    %c0_5 = arith.constant 0 : index
    %7 = vector.load %arg1[%c32, %c0_5] : memref<192x32xbf16, #tpu.memory_space<vmem>>, vector<32x32xbf16>
    %cst_6 = arith.constant dense<0.000000e+00> : vector<16x32xf32>
    %8 = tpu.matmul %1, %7, %cst_6 {dimension_numbers = #tpu.dot_dimension_numbers<[1], [0], [0], [1], [0, 0, 1, 1], [], []>} : vector<16x32xbf16>, vector<32x32xbf16>, vector<16x32xf32> -> vector<16x32xf32>
    %c1 = arith.constant 1 : index
    %c0_7 = arith.constant 0 : index
    %9 = vector.load %arg2[%c1, %c0_7] : memref<16x32xf32, #tpu.memory_space<vmem>>, vector<1x32xf32>
    %10 = vector.broadcast %9 : vector<1x32xf32> to vector<16x32xf32>
    %11 = arith.addf %8, %10 : vector<16x32xf32>
    %c64 = arith.constant 64 : index
    %c0_8 = arith.constant 0 : index
    %12 = vector.load %arg1[%c64, %c0_8] : memref<192x32xbf16, #tpu.memory_space<vmem>>, vector<32x32xbf16>
    %cst_9 = arith.constant dense<0.000000e+00> : vector<16x32xf32>
    %13 = tpu.matmul %1, %12, %cst_9 {dimension_numbers = #tpu.dot_dimension_numbers<[1], [0], [0], [1], [0, 0, 1, 1], [], []>} : vector<16x32xbf16>, vector<32x32xbf16>, vector<16x32xf32> -> vector<16x32xf32>
    %c2 = arith.constant 2 : index
    %c0_10 = arith.constant 0 : index
    %14 = vector.load %arg2[%c2, %c0_10] : memref<16x32xf32, #tpu.memory_space<vmem>>, vector<1x32xf32>
    %15 = vector.broadcast %14 : vector<1x32xf32> to vector<16x32xf32>
    %16 = arith.addf %13, %15 : vector<16x32xf32>
    %17 = arith.truncf %11 : vector<16x32xf32> to vector<16x32xbf16>
    %18 = arith.truncf %16 : vector<16x32xf32> to vector<16x32xbf16>
    %c0_11 = arith.constant 0 : index
    %c0_12 = arith.constant 0 : index
    %19 = vector.load %arg3[%c0_11, %c0_12] : memref<16x16xf32, #tpu.memory_space<vmem>>, vector<16x16xf32>
    %c10 = arith.constant 10 : index
    %c0_13 = arith.constant 0 : index
    %20 = vector.load %arg2[%c10, %c0_13] : memref<16x32xf32, #tpu.memory_space<vmem>>, vector<1x32xf32>
    %21 = vector.broadcast %20 : vector<1x32xf32> to vector<16x32xf32>
    %22 = arith.mulf %6, %21 : vector<16x32xf32>
    %23 = arith.truncf %22 : vector<16x32xf32> to vector<16x32xbf16>
    %cst_14 = arith.constant dense<0.000000e+00> : vector<16x16xf32>
    %24 = tpu.matmul %23, %17, %cst_14 {dimension_numbers = #tpu.dot_dimension_numbers<[1], [1], [0], [0], [0, 0, 1, 0], [], []>} : vector<16x32xbf16>, vector<16x32xbf16>, vector<16x16xf32> -> vector<16x16xf32>
    %25 = arith.addf %24, %19 : vector<16x16xf32>
    %cst_15 = arith.constant dense<0xFF800000> : vector<16xf32>
    %26 = vector.multi_reduction <maximumf>, %25, %cst_15 [1] : vector<16x16xf32> to vector<16xf32>
    %27 = vector.shape_cast %26 : vector<16xf32> to vector<16x1xf32>
    %28 = vector.broadcast %27 : vector<16x1xf32> to vector<16x16xf32>
    %29 = arith.subf %25, %28 : vector<16x16xf32>
    %30 = math.exp %29 : vector<16x16xf32>
    %cst_16 = arith.constant dense<0.000000e+00> : vector<16xf32>
    %31 = vector.multi_reduction <add>, %30, %cst_16 [1] : vector<16x16xf32> to vector<16xf32>
    %32 = vector.shape_cast %31 : vector<16xf32> to vector<16x1xf32>
    %33 = tpu.reciprocal %32 {approx = true} : vector<16x1xf32> -> vector<16x1xf32>
    %34 = vector.broadcast %33 : vector<16x1xf32> to vector<16x16xf32>
    %35 = arith.mulf %30, %34 : vector<16x16xf32>
    %36 = arith.truncf %35 : vector<16x16xf32> to vector<16x16xbf16>
    %cst_17 = arith.constant dense<0.000000e+00> : vector<16x32xf32>
    %37 = tpu.matmul %36, %18, %cst_17 {dimension_numbers = #tpu.dot_dimension_numbers<[1], [0], [0], [1], [0, 0, 1, 1], [], []>} : vector<16x16xbf16>, vector<16x32xbf16>, vector<16x32xf32> -> vector<16x32xf32>
    %38 = vector.broadcast %20 : vector<1x32xf32> to vector<16x32xf32>
    %39 = arith.mulf %37, %38 : vector<16x32xf32>
    %c11 = arith.constant 11 : index
    %c0_18 = arith.constant 0 : index
    %40 = vector.load %arg2[%c11, %c0_18] : memref<16x32xf32, #tpu.memory_space<vmem>>, vector<1x32xf32>
    %41 = vector.broadcast %40 : vector<1x32xf32> to vector<16x32xf32>
    %42 = arith.mulf %6, %41 : vector<16x32xf32>
    %43 = arith.truncf %42 : vector<16x32xf32> to vector<16x32xbf16>
    %cst_19 = arith.constant dense<0.000000e+00> : vector<16x16xf32>
    %44 = tpu.matmul %43, %17, %cst_19 {dimension_numbers = #tpu.dot_dimension_numbers<[1], [1], [0], [0], [0, 0, 1, 0], [], []>} : vector<16x32xbf16>, vector<16x32xbf16>, vector<16x16xf32> -> vector<16x16xf32>
    %45 = arith.addf %44, %19 : vector<16x16xf32>
    %cst_20 = arith.constant dense<0xFF800000> : vector<16xf32>
    %46 = vector.multi_reduction <maximumf>, %45, %cst_20 [1] : vector<16x16xf32> to vector<16xf32>
    %47 = vector.shape_cast %46 : vector<16xf32> to vector<16x1xf32>
    %48 = vector.broadcast %47 : vector<16x1xf32> to vector<16x16xf32>
    %49 = arith.subf %45, %48 : vector<16x16xf32>
    %50 = math.exp %49 : vector<16x16xf32>
    %cst_21 = arith.constant dense<0.000000e+00> : vector<16xf32>
    %51 = vector.multi_reduction <add>, %50, %cst_21 [1] : vector<16x16xf32> to vector<16xf32>
    %52 = vector.shape_cast %51 : vector<16xf32> to vector<16x1xf32>
    %53 = tpu.reciprocal %52 {approx = true} : vector<16x1xf32> -> vector<16x1xf32>
    %54 = vector.broadcast %53 : vector<16x1xf32> to vector<16x16xf32>
    %55 = arith.mulf %50, %54 : vector<16x16xf32>
    %56 = arith.truncf %55 : vector<16x16xf32> to vector<16x16xbf16>
    %cst_22 = arith.constant dense<0.000000e+00> : vector<16x32xf32>
    %57 = tpu.matmul %56, %18, %cst_22 {dimension_numbers = #tpu.dot_dimension_numbers<[1], [0], [0], [1], [0, 0, 1, 1], [], []>} : vector<16x16xbf16>, vector<16x32xbf16>, vector<16x32xf32> -> vector<16x32xf32>
    %58 = vector.broadcast %40 : vector<1x32xf32> to vector<16x32xf32>
    %59 = arith.mulf %57, %58 : vector<16x32xf32>
    %60 = arith.addf %39, %59 : vector<16x32xf32>
    %c12 = arith.constant 12 : index
    %c0_23 = arith.constant 0 : index
    %61 = vector.load %arg2[%c12, %c0_23] : memref<16x32xf32, #tpu.memory_space<vmem>>, vector<1x32xf32>
    %62 = vector.broadcast %61 : vector<1x32xf32> to vector<16x32xf32>
    %63 = arith.mulf %6, %62 : vector<16x32xf32>
    %64 = arith.truncf %63 : vector<16x32xf32> to vector<16x32xbf16>
    %cst_24 = arith.constant dense<0.000000e+00> : vector<16x16xf32>
    %65 = tpu.matmul %64, %17, %cst_24 {dimension_numbers = #tpu.dot_dimension_numbers<[1], [1], [0], [0], [0, 0, 1, 0], [], []>} : vector<16x32xbf16>, vector<16x32xbf16>, vector<16x16xf32> -> vector<16x16xf32>
    %66 = arith.addf %65, %19 : vector<16x16xf32>
    %cst_25 = arith.constant dense<0xFF800000> : vector<16xf32>
    %67 = vector.multi_reduction <maximumf>, %66, %cst_25 [1] : vector<16x16xf32> to vector<16xf32>
    %68 = vector.shape_cast %67 : vector<16xf32> to vector<16x1xf32>
    %69 = vector.broadcast %68 : vector<16x1xf32> to vector<16x16xf32>
    %70 = arith.subf %66, %69 : vector<16x16xf32>
    %71 = math.exp %70 : vector<16x16xf32>
    %cst_26 = arith.constant dense<0.000000e+00> : vector<16xf32>
    %72 = vector.multi_reduction <add>, %71, %cst_26 [1] : vector<16x16xf32> to vector<16xf32>
    %73 = vector.shape_cast %72 : vector<16xf32> to vector<16x1xf32>
    %74 = tpu.reciprocal %73 {approx = true} : vector<16x1xf32> -> vector<16x1xf32>
    %75 = vector.broadcast %74 : vector<16x1xf32> to vector<16x16xf32>
    %76 = arith.mulf %71, %75 : vector<16x16xf32>
    %77 = arith.truncf %76 : vector<16x16xf32> to vector<16x16xbf16>
    %cst_27 = arith.constant dense<0.000000e+00> : vector<16x32xf32>
    %78 = tpu.matmul %77, %18, %cst_27 {dimension_numbers = #tpu.dot_dimension_numbers<[1], [0], [0], [1], [0, 0, 1, 1], [], []>} : vector<16x16xbf16>, vector<16x32xbf16>, vector<16x32xf32> -> vector<16x32xf32>
    %79 = vector.broadcast %61 : vector<1x32xf32> to vector<16x32xf32>
    %80 = arith.mulf %78, %79 : vector<16x32xf32>
    %c13 = arith.constant 13 : index
    %c0_28 = arith.constant 0 : index
    %81 = vector.load %arg2[%c13, %c0_28] : memref<16x32xf32, #tpu.memory_space<vmem>>, vector<1x32xf32>
    %82 = vector.broadcast %81 : vector<1x32xf32> to vector<16x32xf32>
    %83 = arith.mulf %6, %82 : vector<16x32xf32>
    %84 = arith.truncf %83 : vector<16x32xf32> to vector<16x32xbf16>
    %cst_29 = arith.constant dense<0.000000e+00> : vector<16x16xf32>
    %85 = tpu.matmul %84, %17, %cst_29 {dimension_numbers = #tpu.dot_dimension_numbers<[1], [1], [0], [0], [0, 0, 1, 0], [], []>} : vector<16x32xbf16>, vector<16x32xbf16>, vector<16x16xf32> -> vector<16x16xf32>
    %86 = arith.addf %85, %19 : vector<16x16xf32>
    %cst_30 = arith.constant dense<0xFF800000> : vector<16xf32>
    %87 = vector.multi_reduction <maximumf>, %86, %cst_30 [1] : vector<16x16xf32> to vector<16xf32>
    %88 = vector.shape_cast %87 : vector<16xf32> to vector<16x1xf32>
    %89 = vector.broadcast %88 : vector<16x1xf32> to vector<16x16xf32>
    %90 = arith.subf %86, %89 : vector<16x16xf32>
    %91 = math.exp %90 : vector<16x16xf32>
    %cst_31 = arith.constant dense<0.000000e+00> : vector<16xf32>
    %92 = vector.multi_reduction <add>, %91, %cst_31 [1] : vector<16x16xf32> to vector<16xf32>
    %93 = vector.shape_cast %92 : vector<16xf32> to vector<16x1xf32>
    %94 = tpu.reciprocal %93 {approx = true} : vector<16x1xf32> -> vector<16x1xf32>
    %95 = vector.broadcast %94 : vector<16x1xf32> to vector<16x16xf32>
    %96 = arith.mulf %91, %95 : vector<16x16xf32>
    %97 = arith.truncf %96 : vector<16x16xf32> to vector<16x16xbf16>
    %cst_32 = arith.constant dense<0.000000e+00> : vector<16x32xf32>
    %98 = tpu.matmul %97, %18, %cst_32 {dimension_numbers = #tpu.dot_dimension_numbers<[1], [0], [0], [1], [0, 0, 1, 1], [], []>} : vector<16x16xbf16>, vector<16x32xbf16>, vector<16x32xf32> -> vector<16x32xf32>
    %99 = vector.broadcast %81 : vector<1x32xf32> to vector<16x32xf32>
    %100 = arith.mulf %98, %99 : vector<16x32xf32>
    %101 = arith.addf %80, %100 : vector<16x32xf32>
    %102 = arith.addf %60, %101 : vector<16x32xf32>
    %103 = arith.truncf %102 : vector<16x32xf32> to vector<16x32xbf16>
    %c96 = arith.constant 96 : index
    %c0_33 = arith.constant 0 : index
    %104 = vector.load %arg1[%c96, %c0_33] : memref<192x32xbf16, #tpu.memory_space<vmem>>, vector<32x32xbf16>
    %cst_34 = arith.constant dense<0.000000e+00> : vector<16x32xf32>
    %105 = tpu.matmul %103, %104, %cst_34 {dimension_numbers = #tpu.dot_dimension_numbers<[1], [0], [0], [1], [0, 0, 1, 1], [], []>} : vector<16x32xbf16>, vector<32x32xbf16>, vector<16x32xf32> -> vector<16x32xf32>
    %c3 = arith.constant 3 : index
    %c0_35 = arith.constant 0 : index
    %106 = vector.load %arg2[%c3, %c0_35] : memref<16x32xf32, #tpu.memory_space<vmem>>, vector<1x32xf32>
    %107 = vector.broadcast %106 : vector<1x32xf32> to vector<16x32xf32>
    %108 = arith.addf %105, %107 : vector<16x32xf32>
    %109 = arith.addf %108, %0 : vector<16x32xf32>
    %c6 = arith.constant 6 : index
    %c0_36 = arith.constant 0 : index
    %110 = vector.load %arg2[%c6, %c0_36] : memref<16x32xf32, #tpu.memory_space<vmem>>, vector<1x32xf32>
    %c7 = arith.constant 7 : index
    %c0_37 = arith.constant 0 : index
    %111 = vector.load %arg2[%c7, %c0_37] : memref<16x32xf32, #tpu.memory_space<vmem>>, vector<1x32xf32>
    %cst_38 = arith.constant dense<0.000000e+00> : vector<16xf32>
    %112 = vector.multi_reduction <add>, %109, %cst_38 [1] : vector<16x32xf32> to vector<16xf32>
    %113 = vector.shape_cast %112 : vector<16xf32> to vector<16x1xf32>
    %cst_39 = arith.constant 3.200000e+01 : f32
    %114 = vector.broadcast %cst_39 : f32 to vector<16x1xf32>
    %115 = arith.divf %113, %114 : vector<16x1xf32>
    %116 = vector.broadcast %115 : vector<16x1xf32> to vector<16x32xf32>
    %117 = arith.subf %109, %116 : vector<16x32xf32>
    %118 = arith.mulf %117, %117 : vector<16x32xf32>
    %cst_40 = arith.constant dense<0.000000e+00> : vector<16xf32>
    %119 = vector.multi_reduction <add>, %118, %cst_40 [1] : vector<16x32xf32> to vector<16xf32>
    %120 = vector.shape_cast %119 : vector<16xf32> to vector<16x1xf32>
    %cst_41 = arith.constant 3.200000e+01 : f32
    %121 = vector.broadcast %cst_41 : f32 to vector<16x1xf32>
    %122 = arith.divf %120, %121 : vector<16x1xf32>
    %cst_42 = arith.constant 9.99999974E-6 : f32
    %123 = vector.broadcast %cst_42 : f32 to vector<16x1xf32>
    %124 = arith.addf %122, %123 : vector<16x1xf32>
    %125 = math.rsqrt %124 : vector<16x1xf32>
    %126 = vector.broadcast %115 : vector<16x1xf32> to vector<16x32xf32>
    %127 = arith.subf %109, %126 : vector<16x32xf32>
    %128 = vector.broadcast %125 : vector<16x1xf32> to vector<16x32xf32>
    %129 = arith.mulf %127, %128 : vector<16x32xf32>
    %130 = vector.broadcast %110 : vector<1x32xf32> to vector<16x32xf32>
    %131 = arith.mulf %129, %130 : vector<16x32xf32>
    %132 = vector.broadcast %111 : vector<1x32xf32> to vector<16x32xf32>
    %133 = arith.addf %131, %132 : vector<16x32xf32>
    %134 = arith.truncf %133 : vector<16x32xf32> to vector<16x32xbf16>
    %c128 = arith.constant 128 : index
    %c0_43 = arith.constant 0 : index
    %135 = vector.load %arg1[%c128, %c0_43] : memref<192x32xbf16, #tpu.memory_space<vmem>>, vector<32x32xbf16>
    %cst_44 = arith.constant dense<0.000000e+00> : vector<16x32xf32>
    %136 = tpu.matmul %134, %135, %cst_44 {dimension_numbers = #tpu.dot_dimension_numbers<[1], [0], [0], [1], [0, 0, 1, 1], [], []>} : vector<16x32xbf16>, vector<32x32xbf16>, vector<16x32xf32> -> vector<16x32xf32>
    %c4 = arith.constant 4 : index
    %c0_45 = arith.constant 0 : index
    %137 = vector.load %arg2[%c4, %c0_45] : memref<16x32xf32, #tpu.memory_space<vmem>>, vector<1x32xf32>
    %138 = vector.broadcast %137 : vector<1x32xf32> to vector<16x32xf32>
    %139 = arith.addf %136, %138 : vector<16x32xf32>
    %cst_46 = arith.constant 0.000000e+00 : f32
    %140 = vector.broadcast %cst_46 : f32 to vector<16x32xf32>
    %141 = arith.maximumf %139, %140 : vector<16x32xf32>
    %142 = arith.truncf %141 : vector<16x32xf32> to vector<16x32xbf16>
    %c160 = arith.constant 160 : index
    %c0_47 = arith.constant 0 : index
    %143 = vector.load %arg1[%c160, %c0_47] : memref<192x32xbf16, #tpu.memory_space<vmem>>, vector<32x32xbf16>
    %cst_48 = arith.constant dense<0.000000e+00> : vector<16x32xf32>
    %144 = tpu.matmul %142, %143, %cst_48 {dimension_numbers = #tpu.dot_dimension_numbers<[1], [0], [0], [1], [0, 0, 1, 1], [], []>} : vector<16x32xbf16>, vector<32x32xbf16>, vector<16x32xf32> -> vector<16x32xf32>
    %c5 = arith.constant 5 : index
    %c0_49 = arith.constant 0 : index
    %145 = vector.load %arg2[%c5, %c0_49] : memref<16x32xf32, #tpu.memory_space<vmem>>, vector<1x32xf32>
    %146 = vector.broadcast %145 : vector<1x32xf32> to vector<16x32xf32>
    %147 = arith.addf %144, %146 : vector<16x32xf32>
    %148 = arith.addf %147, %133 : vector<16x32xf32>
    %c8 = arith.constant 8 : index
    %c0_50 = arith.constant 0 : index
    %149 = vector.load %arg2[%c8, %c0_50] : memref<16x32xf32, #tpu.memory_space<vmem>>, vector<1x32xf32>
    %c9 = arith.constant 9 : index
    %c0_51 = arith.constant 0 : index
    %150 = vector.load %arg2[%c9, %c0_51] : memref<16x32xf32, #tpu.memory_space<vmem>>, vector<1x32xf32>
    %cst_52 = arith.constant dense<0.000000e+00> : vector<16xf32>
    %151 = vector.multi_reduction <add>, %148, %cst_52 [1] : vector<16x32xf32> to vector<16xf32>
    %152 = vector.shape_cast %151 : vector<16xf32> to vector<16x1xf32>
    %cst_53 = arith.constant 3.200000e+01 : f32
    %153 = vector.broadcast %cst_53 : f32 to vector<16x1xf32>
    %154 = arith.divf %152, %153 : vector<16x1xf32>
    %155 = vector.broadcast %154 : vector<16x1xf32> to vector<16x32xf32>
    %156 = arith.subf %148, %155 : vector<16x32xf32>
    %157 = arith.mulf %156, %156 : vector<16x32xf32>
    %cst_54 = arith.constant dense<0.000000e+00> : vector<16xf32>
    %158 = vector.multi_reduction <add>, %157, %cst_54 [1] : vector<16x32xf32> to vector<16xf32>
    %159 = vector.shape_cast %158 : vector<16xf32> to vector<16x1xf32>
    %cst_55 = arith.constant 3.200000e+01 : f32
    %160 = vector.broadcast %cst_55 : f32 to vector<16x1xf32>
    %161 = arith.divf %159, %160 : vector<16x1xf32>
    %cst_56 = arith.constant 9.99999974E-6 : f32
    %162 = vector.broadcast %cst_56 : f32 to vector<16x1xf32>
    %163 = arith.addf %161, %162 : vector<16x1xf32>
    %164 = math.rsqrt %163 : vector<16x1xf32>
    %165 = vector.broadcast %154 : vector<16x1xf32> to vector<16x32xf32>
    %166 = arith.subf %148, %165 : vector<16x32xf32>
    %167 = vector.broadcast %164 : vector<16x1xf32> to vector<16x32xf32>
    %168 = arith.mulf %166, %167 : vector<16x32xf32>
    %169 = vector.broadcast %149 : vector<1x32xf32> to vector<16x32xf32>
    %170 = arith.mulf %168, %169 : vector<16x32xf32>
    %171 = vector.broadcast %150 : vector<1x32xf32> to vector<16x32xf32>
    %172 = arith.addf %170, %171 : vector<16x32xf32>
    %c0_57 = arith.constant 0 : index
    %c0_58 = arith.constant 0 : index
    %173 = vector.load %arg4[%c0_57, %c0_58] : memref<16x32xf32, #tpu.memory_space<vmem>>, vector<16x32xf32>
    tpu.vector_store %arg4[%c0_57, %c0_58], %172 {strides = array<i32>} : memref<16x32xf32, #tpu.memory_space<vmem>>, vector<16x32xf32>,
    return
  }
}

</mosaic_0001>

<llo_original>
// kernel: tpu_custom_call.1
$region0: #{tpu_custom_call.1}
  #allocation0 [shape = 'u32[]', space=smem, size = 0x4, offset = 0x4, fixed_abs, tag = 'smem constant byte address 0x4 - core index']
  #allocation1 [shape = 'u32[72,128]{1,0:T(1,128)}', space=vmem, size = 0x9000, scoped, tag = 'internal scratch']
  %s0 = inlined_call_operand.vmem [shape: f32[16,32], index: 0, kind: input, shape index: {}]
  %s1 = inlined_call_operand.vmem [shape: bf16[192,32], index: 1, kind: input, shape index: {}]
  %s2 = inlined_call_operand.vmem [shape: f32[16,32], index: 2, kind: input, shape index: {}]
  %s3 = inlined_call_operand.vmem [shape: f32[16,16], index: 3, kind: input, shape index: {}]
  %s4 = inlined_call_operand.hbm [shape: f32[16,32], index: 4, kind: output, shape index: {}]
  %s5 = sld [smem:[#allocation0]]
  $region26: #{tpu_custom_call.1} parent=0
    _
  %s7 = ssub.s32 1, %s5
  %s8 = scalar_select 0, %s7, %s5
  $region1: #{tpu_custom_call.1} parent=0
    #allocation2 [shape = 'u8[8192]{0}', space=vmem, size = 0x2000, scoped, tag = 'output window, operand 0, single buffered']
    #allocation3 [shape = 's32[1]{0}', space=sflag, size = 0x4, scoped, tag = 'scoped memory for tpu_custom_call.1']
    %9 = vsyncpa [#allocation3], 0
    // Predicated region
    $region2: #{tpu_custom_call.1} parent=1 // pred_check
      _
    $region3: #{tpu_custom_call.1} parent=1 // pred_check_branch
      %11 = sbr.rel (0) target = $region5
    $region4: #{tpu_custom_call.1} parent=1 // pred_region
      _
    $region5: #{tpu_custom_call.1} parent=1 // pred_fallthru
      _
    // Predicated region
    $region6: #{tpu_custom_call.1} parent=1 // pred_check
      _
    $region7: #{tpu_custom_call.1} parent=1 // pred_check_branch
      %13 = sbr.rel (0) target = $region9
    $region8: #{tpu_custom_call.1} parent=1 // pred_region
      _
    $region9: #{tpu_custom_call.1} parent=1 // pred_fallthru
      _
    // Predicated region
    $region10: #{tpu_custom_call.1} parent=1 // pred_check
      _
    $region11: #{tpu_custom_call.1} parent=1 // pred_check_branch
      %15 = sbr.rel (0) target = $region13
    $region12: #{tpu_custom_call.1} parent=1 // pred_region
      _
    $region13: #{tpu_custom_call.1} parent=1 // pred_fallthru
      _
    // Predicated region
    $region14: #{tpu_custom_call.1} parent=1 // pred_check
      _
    $region15: #{tpu_custom_call.1} parent=1 // pred_check_branch
      %17 = sbr.rel (0) target = $region17
    $region16: #{tpu_custom_call.1} parent=1 // pred_region
      _
    $region17: #{tpu_custom_call.1} parent=1 // pred_fallthru
      _
    %v19 = vld [vmem:[%s0] sm:$0xff]
    %v20 = vld [vmem:[%s0 + $0x8] sm:$0xff]
    %v21 = vpack.c.bf16 %v20, %v19
    %v22 = vld [vmem:[%s1] sm:$0xf]
    %v23 = vld [vmem:[%s1 + $0x4] sm:$0xf]
    %v24 = vld [vmem:[%s1 + $0x8] sm:$0xf]
    %v25 = vld [vmem:[%s1 + $0xc] sm:$0xf]
    %v26 = vld [vmem:[%s2] sm:$0x1]
    %v27 = vperm.slane %v26, 0
    %v32 = vunpack.c.l.b16 %v22
    %v33 = vunpack.c.l.b16 %v23
    %v34 = vunpack.c.l.b16 %v24
    %v35 = vunpack.c.l.b16 %v25
    %v36 = vpack.c.b16 %v33, %v32
    %v37 = vpack.c.b16 %v35, %v34
    %vm40 = vcmask 261120
    %v42 = vsel %vm40, %v21, 0
    %44 = vmatpush.bf16.msra.mxu0 0
    %45 = vmatpush.bf16.msra.mxu0 0
    %46 = vmatpush.bf16.msra.mxu0 0
    %47 = vmatpush.bf16.msra.mxu0 0
    %48 = vmatpush.bf16.msra.mxu0 0
    %49 = vmatpush.bf16.msra.mxu0 0
    %50 = vmatpush.bf16.msra.mxu0 %v37
    %51 = vmatpush.bf16.msra.mxu0 %v36
    %52 = vmatmul.bf16.gmra.mxu0 %v42
    %v53 = vpop.f32.mrf.mxu0
    %v54 = vadd.f32 %v27, %v53
    %v55 = vpop.f32.mrf.mxu0
    %v56 = vadd.f32 %v27, %v55
    %57 = vdwg.mxu0
    %v58 = vld [vmem:[%s1 + $0x10] sm:$0xf]
    %v59 = vld [vmem:[%s1 + $0x14] sm:$0xf]
    %v60 = vld [vmem:[%s1 + $0x18] sm:$0xf]
    %v61 = vld [vmem:[%s1 + $0x1c] sm:$0xf]
    %v62 = vld [vmem:[%s2 + $0x1] sm:$0x1]
    %v63 = vperm.slane %v62, 0
    %v68 = vunpack.c.l.b16 %v58
    %v69 = vunpack.c.l.b16 %v59
    %v70 = vunpack.c.l.b16 %v60
    %v71 = vunpack.c.l.b16 %v61
    %v72 = vpack.c.b16 %v69, %v68
    %v73 = vpack.c.b16 %v71, %v70
    %76 = vmatpush.bf16.msra.mxu0 0
    %77 = vmatpush.bf16.msra.mxu0 0
    %78 = vmatpush.bf16.msra.mxu0 0
    %79 = vmatpush.bf16.msra.mxu0 0
    %80 = vmatpush.bf16.msra.mxu0 0
    %81 = vmatpush.bf16.msra.mxu0 0
    %82 = vmatpush.bf16.msra.mxu0 %v73
    %83 = vmatpush.bf16.msra.mxu0 %v72
    %84 = vmatmul.bf16.gmra.mxu0 %v42
    %v85 = vpop.f32.mrf.mxu0
    %v86 = vadd.f32 %v63, %v85
    %v87 = vpop.f32.mrf.mxu0
    %v88 = vadd.f32 %v63, %v87
    %89 = vdwg.mxu0
    %v90 = vld [vmem:[%s1 + $0x20] sm:$0xf]
    %v91 = vld [vmem:[%s1 + $0x24] sm:$0xf]
    %v92 = vld [vmem:[%s1 + $0x28] sm:$0xf]
    %v93 = vld [vmem:[%s1 + $0x2c] sm:$0xf]
    %v94 = vld [vmem:[%s2 + $0x2] sm:$0x1]
    %v95 = vperm.slane %v94, 0
    %v100 = vunpack.c.l.b16 %v90
    %v101 = vunpack.c.l.b16 %v91
    %v102 = vunpack.c.l.b16 %v92
    %v103 = vunpack.c.l.b16 %v93
    %v104 = vpack.c.b16 %v101, %v100
    %v105 = vpack.c.b16 %v103, %v102
    %108 = vmatpush.bf16.msra.mxu0 0
    %109 = vmatpush.bf16.msra.mxu0 0
    %110 = vmatpush.bf16.msra.mxu0 0
    %111 = vmatpush.bf16.msra.mxu0 0
    %112 = vmatpush.bf16.msra.mxu0 0
    %113 = vmatpush.bf16.msra.mxu0 0
    %114 = vmatpush.bf16.msra.mxu0 %v105
    %115 = vmatpush.bf16.msra.mxu0 %v104
    %116 = vmatmul.bf16.gmra.mxu0 %v42
    %v117 = vpop.f32.mrf.mxu0
    %v118 = vadd.f32 %v95, %v117
    %v119 = vpop.f32.mrf.mxu0
    %v120 = vadd.f32 %v95, %v119
    %121 = vdwg.mxu0
    %v122 = vpack.c.bf16 %v88, %v86
    %v123 = vpack.c.bf16 %v120, %v118
    %v124 = vld [vmem:[%s3] sm:$0xff]
    %v125 = vld [vmem:[%s3 + $0x8] sm:$0xff]
    %v126 = vld [vmem:[%s2 + $0xa] sm:$0x1]
    %v127 = vperm.slane %v126, 0
    %v128 = vmul.f32 %v54, %v127
    %v129 = vmul.f32 %v56, %v127
    %v130 = vpack.c.bf16 %v129, %v128
    %v132 = vsel %vm40, %v130, 0
    %v135 = vsel %vm40, %v122, 0
    %137 = vmatpush.bf16.xpose.msra.mxu0 0
    %138 = vmatpush.bf16.xpose.msra.mxu0 0
    %139 = vmatpush.bf16.xpose.msra.mxu0 0
    %140 = vmatpush.bf16.xpose.msra.mxu0 0
    %141 = vmatpush.bf16.xpose.msra.mxu0 0
    %142 = vmatpush.bf16.xpose.msra.mxu0 0
    %143 = vmatpush.bf16.xpose.msra.mxu0 0
    %144 = vmatpush.bf16.xpose.msra.mxu0 %v135
    %145 = vmatmul.bf16.gmra.mxu0 %v132
    %v146 = vpop.f32.mrf.mxu0
    %v147 = vadd.f32 %v124, %v146
    %v148 = vpop.f32.mrf.mxu0
    %v149 = vadd.f32 %v125, %v148
    %150 = vdwg.mxu0
    %vm151 = vcmask 130048
    %v152 = vsel %vm151, %v147, -inf
    %153 = vmax.xlane.f32.xlu0 %v152
    %v154 = vpop.xlane.xlu0 %153
    %v155 = vsel %vm151, %v149, -inf
    %156 = vmax.xlane.f32.xlu0 %v155
    %v157 = vpop.xlane.xlu0 %156
    %v158 = vsub.f32 %v147, %v154
    %v159 = vsub.f32 %v149, %v157
    %v160 = vmul.f32 %v158, 1.442695
    %v161 = vpow.pop %v160
    %v162 = vmul.f32 %v159, 1.442695
    %v163 = vpow.pop %v162
    %v164 = vsel %vm151, %v161, 0.0
    %165 = vadd.xlane.f32.xlu0 %v164
    %v166 = vpop.xlane.xlu0 %165
    %v167 = vsel %vm151, %v163, 0.0
    %168 = vadd.xlane.f32.xlu0 %v167
    %v169 = vpop.xlane.xlu0 %168
    %v170 = vrcp.pop %v166
    %v171 = vrcp.pop %v169
    %v172 = vmul.f32 %v161, %v170
    %v173 = vmul.f32 %v163, %v171
    %v174 = vpack.c.bf16 %v173, %v172
    %v176 = vsel %vm151, %v174, 0
    %178 = vmatpush.bf16.msra.mxu0 0
    %179 = vmatpush.bf16.msra.mxu0 0
    %180 = vmatpush.bf16.msra.mxu0 0
    %181 = vmatpush.bf16.msra.mxu0 0
    %182 = vmatpush.bf16.msra.mxu0 0
    %183 = vmatpush.bf16.msra.mxu0 0
    %184 = vmatpush.bf16.msra.mxu0 0
    %185 = vmatpush.bf16.msra.mxu0 %v123
    %186 = vmatmul.bf16.gmra.mxu0 %v176
    %v187 = vpop.f32.mrf.mxu0
    %v188 = vadd.f32 0.0, %v187
    %v189 = vpop.f32.mrf.mxu0
    %v190 = vadd.f32 0.0, %v189
    %191 = vdwg.mxu0
    %v192 = vmul.f32 %v188, %v127
    %v193 = vmul.f32 %v190, %v127
    %v194 = vld [vmem:[%s2 + $0xb] sm:$0x1]
    %v195 = vperm.slane %v194, 0
    %v196 = vmul.f32 %v54, %v195
    %v197 = vmul.f32 %v56, %v195
    %v198 = vpack.c.bf16 %v197, %v196
    %v200 = vsel %vm40, %v198, 0
    %202 = vmatpush.bf16.xpose.msra.mxu0 0
    %203 = vmatpush.bf16.xpose.msra.mxu0 0
    %204 = vmatpush.bf16.xpose.msra.mxu0 0
    %205 = vmatpush.bf16.xpose.msra.mxu0 0
    %206 = vmatpush.bf16.xpose.msra.mxu0 0
    %207 = vmatpush.bf16.xpose.msra.mxu0 0
    %208 = vmatpush.bf16.xpose.msra.mxu0 0
    %209 = vmatpush.bf16.xpose.msra.mxu0 %v135
    %210 = vmatmul.bf16.gmra.mxu0 %v200
    %v211 = vpop.f32.mrf.mxu0
    %v212 = vadd.f32 %v124, %v211
    %v213 = vpop.f32.mrf.mxu0
    %v214 = vadd.f32 %v125, %v213
    %215 = vdwg.mxu0
    %v216 = vsel %vm151, %v212, -inf
    %217 = vmax.xlane.f32.xlu0 %v216
    %v218 = vpop.xlane.xlu0 %217
    %v219 = vsel %vm151, %v214, -inf
    %220 = vmax.xlane.f32.xlu0 %v219
    %v221 = vpop.xlane.xlu0 %220
    %v222 = vsub.f32 %v212, %v218
    %v223 = vsub.f32 %v214, %v221
    %v224 = vmul.f32 %v222, 1.442695
    %v225 = vpow.pop %v224
    %v226 = vmul.f32 %v223, 1.442695
    %v227 = vpow.pop %v226
    %v228 = vsel %vm151, %v225, 0.0
    %229 = vadd.xlane.f32.xlu0 %v228
    %v230 = vpop.xlane.xlu0 %229
    %v231 = vsel %vm151, %v227, 0.0
    %232 = vadd.xlane.f32.xlu0 %v231
    %v233 = vpop.xlane.xlu0 %232
    %v234 = vrcp.pop %v230
    %v235 = vrcp.pop %v233
    %v236 = vmul.f32 %v225, %v234
    %v237 = vmul.f32 %v227, %v235
    %v238 = vpack.c.bf16 %v237, %v236
    %v240 = vsel %vm151, %v238, 0
    %242 = vmatpush.bf16.msra.mxu0 0
    %243 = vmatpush.bf16.msra.mxu0 0
    %244 = vmatpush.bf16.msra.mxu0 0
    %245 = vmatpush.bf16.msra.mxu0 0
    %246 = vmatpush.bf16.msra.mxu0 0
    %247 = vmatpush.bf16.msra.mxu0 0
    %248 = vmatpush.bf16.msra.mxu0 0
    %249 = vmatpush.bf16.msra.mxu0 %v123
    %250 = vmatmul.bf16.gmra.mxu0 %v240
    %v251 = vpop.f32.mrf.mxu0
    %v252 = vadd.f32 0.0, %v251
    %v253 = vpop.f32.mrf.mxu0
    %v254 = vadd.f32 0.0, %v253
    %255 = vdwg.mxu0
    %v256 = vmul.f32 %v252, %v195
    %v257 = vmul.f32 %v254, %v195
    %v258 = vadd.f32 %v192, %v256
    %v259 = vadd.f32 %v193, %v257
    %v260 = vld [vmem:[%s2 + $0xc] sm:$0x1]
    %v261 = vperm.slane %v260, 0
    %v262 = vmul.f32 %v54, %v261
    %v263 = vmul.f32 %v56, %v261
    %v264 = vpack.c.bf16 %v263, %v262
    %v266 = vsel %vm40, %v264, 0
    %268 = vmatpush.bf16.xpose.msra.mxu0 0
    %269 = vmatpush.bf16.xpose.msra.mxu0 0
    %270 = vmatpush.bf16.xpose.msra.mxu0 0
    %271 = vmatpush.bf16.xpose.msra.mxu0 0
    %272 = vmatpush.bf16.xpose.msra.mxu0 0
    %273 = vmatpush.bf16.xpose.msra.mxu0 0
    %274 = vmatpush.bf16.xpose.msra.mxu0 0
    %275 = vmatpush.bf16.xpose.msra.mxu0 %v135
    %276 = vmatmul.bf16.gmra.mxu0 %v266
    %v277 = vpop.f32.mrf.mxu0
    %v278 = vadd.f32 %v124, %v277
    %v279 = vpop.f32.mrf.mxu0
    %v280 = vadd.f32 %v125, %v279
    %281 = vdwg.mxu0
    %v282 = vsel %vm151, %v278, -inf
    %283 = vmax.xlane.f32.xlu0 %v282
    %v284 = vpop.xlane.xlu0 %283
    %v285 = vsel %vm151, %v280, -inf
    %286 = vmax.xlane.f32.xlu0 %v285
    %v287 = vpop.xlane.xlu0 %286
    %v288 = vsub.f32 %v278, %v284
    %v289 = vsub.f32 %v280, %v287
    %v290 = vmul.f32 %v288, 1.442695
    %v291 = vpow.pop %v290
    %v292 = vmul.f32 %v289, 1.442695
    %v293 = vpow.pop %v292
    %v294 = vsel %vm151, %v291, 0.0
    %295 = vadd.xlane.f32.xlu0 %v294
    %v296 = vpop.xlane.xlu0 %295
    %v297 = vsel %vm151, %v293, 0.0
    %298 = vadd.xlane.f32.xlu0 %v297
    %v299 = vpop.xlane.xlu0 %298
    %v300 = vrcp.pop %v296
    %v301 = vrcp.pop %v299
    %v302 = vmul.f32 %v291, %v300
    %v303 = vmul.f32 %v293, %v301
    %v304 = vpack.c.bf16 %v303, %v302
    %v306 = vsel %vm151, %v304, 0
    %308 = vmatpush.bf16.msra.mxu0 0
    %309 = vmatpush.bf16.msra.mxu0 0
    %310 = vmatpush.bf16.msra.mxu0 0
    %311 = vmatpush.bf16.msra.mxu0 0
    %312 = vmatpush.bf16.msra.mxu0 0
    %313 = vmatpush.bf16.msra.mxu0 0
    %314 = vmatpush.bf16.msra.mxu0 0
    %315 = vmatpush.bf16.msra.mxu0 %v123
    %316 = vmatmul.bf16.gmra.mxu0 %v306
    %v317 = vpop.f32.mrf.mxu0
    %v318 = vadd.f32 0.0, %v317
    %v319 = vpop.f32.mrf.mxu0
    %v320 = vadd.f32 0.0, %v319
    %321 = vdwg.mxu0
    %v322 = vmul.f32 %v318, %v261
    %v323 = vmul.f32 %v320, %v261
    %v324 = vld [vmem:[%s2 + $0xd] sm:$0x1]
    %v325 = vperm.slane %v324, 0
    %v326 = vmul.f32 %v54, %v325
    %v327 = vmul.f32 %v56, %v325
    %v328 = vpack.c.bf16 %v327, %v326
    %v330 = vsel %vm40, %v328, 0
    %332 = vmatpush.bf16.xpose.msra.mxu0 0
    %333 = vmatpush.bf16.xpose.msra.mxu0 0
    %334 = vmatpush.bf16.xpose.msra.mxu0 0
    %335 = vmatpush.bf16.xpose.msra.mxu0 0
    %336 = vmatpush.bf16.xpose.msra.mxu0 0
    %337 = vmatpush.bf16.xpose.msra.mxu0 0
    %338 = vmatpush.bf16.xpose.msra.mxu0 0
    %339 = vmatpush.bf16.xpose.msra.mxu0 %v135
    %340 = vmatmul.bf16.gmra.mxu0 %v330
    %v341 = vpop.f32.mrf.mxu0
    %v342 = vadd.f32 %v124, %v341
    %v343 = vpop.f32.mrf.mxu0
    %v344 = vadd.f32 %v125, %v343
    %345 = vdwg.mxu0
    %v346 = vsel %vm151, %v342, -inf
    %347 = vmax.xlane.f32.xlu0 %v346
    %v348 = vpop.xlane.xlu0 %347
    %v349 = vsel %vm151, %v344, -inf
    %350 = vmax.xlane.f32.xlu0 %v349
    %v351 = vpop.xlane.xlu0 %350
    %v352 = vsub.f32 %v342, %v348
    %v353 = vsub.f32 %v344, %v351
    %v354 = vmul.f32 %v352, 1.442695
    %v355 = vpow.pop %v354
    %v356 = vmul.f32 %v353, 1.442695
    %v357 = vpow.pop %v356
    %v358 = vsel %vm151, %v355, 0.0
    %359 = vadd.xlane.f32.xlu0 %v358
    %v360 = vpop.xlane.xlu0 %359
    %v361 = vsel %vm151, %v357, 0.0
    %362 = vadd.xlane.f32.xlu0 %v361
    %v363 = vpop.xlane.xlu0 %362
    %v364 = vrcp.pop %v360
    %v365 = vrcp.pop %v363
    %v366 = vmul.f32 %v355, %v364
    %v367 = vmul.f32 %v357, %v365
    %v368 = vpack.c.bf16 %v367, %v366
    %v370 = vsel %vm151, %v368, 0
    %372 = vmatpush.bf16.msra.mxu0 0
    %373 = vmatpush.bf16.msra.mxu0 0
    %374 = vmatpush.bf16.msra.mxu0 0
    %375 = vmatpush.bf16.msra.mxu0 0
    %376 = vmatpush.bf16.msra.mxu0 0
    %377 = vmatpush.bf16.msra.mxu0 0
    %378 = vmatpush.bf16.msra.mxu0 0
    %379 = vmatpush.bf16.msra.mxu0 %v123
    %380 = vmatmul.bf16.gmra.mxu0 %v370
    %v381 = vpop.f32.mrf.mxu0
    %v382 = vadd.f32 0.0, %v381
    %v383 = vpop.f32.mrf.mxu0
    %v384 = vadd.f32 0.0, %v383
    %385 = vdwg.mxu0
    %v386 = vmul.f32 %v382, %v325
    %v387 = vmul.f32 %v384, %v325
    %v388 = vadd.f32 %v322, %v386
    %v389 = vadd.f32 %v323, %v387
    %v390 = vadd.f32 %v258, %v388
    %v391 = vadd.f32 %v259, %v389
    %v392 = vpack.c.bf16 %v391, %v390
    %v393 = vld [vmem:[%s1 + $0x30] sm:$0xf]
    %v394 = vld [vmem:[%s1 + $0x34] sm:$0xf]
    %v395 = vld [vmem:[%s1 + $0x38] sm:$0xf]
    %v396 = vld [vmem:[%s1 + $0x3c] sm:$0xf]
    %v397 = vld [vmem:[%s2 + $0x3] sm:$0x1]
    %v398 = vperm.slane %v397, 0
    %v403 = vunpack.c.l.b16 %v393
    %v404 = vunpack.c.l.b16 %v394
    %v405 = vunpack.c.l.b16 %v395
    %v406 = vunpack.c.l.b16 %v396
    %v407 = vpack.c.b16 %v404, %v403
    %v408 = vpack.c.b16 %v406, %v405
    %v412 = vsel %vm40, %v392, 0
    %414 = vmatpush.bf16.msra.mxu0 0
    %415 = vmatpush.bf16.msra.mxu0 0
    %416 = vmatpush.bf16.msra.mxu0 0
    %417 = vmatpush.bf16.msra.mxu0 0
    %418 = vmatpush.bf16.msra.mxu0 0
    %419 = vmatpush.bf16.msra.mxu0 0
    %420 = vmatpush.bf16.msra.mxu0 %v408
    %421 = vmatpush.bf16.msra.mxu0 %v407
    %422 = vmatmul.bf16.gmra.mxu0 %v412
    %v423 = vpop.f32.mrf.mxu0
    %v424 = vadd.f32 %v398, %v423
    %v425 = vpop.f32.mrf.mxu0
    %v426 = vadd.f32 %v398, %v425
    %427 = vdwg.mxu0
    %v428 = vadd.f32 %v424, %v19
    %v429 = vadd.f32 %v426, %v20
    %v430 = vld [vmem:[%s2 + $0x6] sm:$0x1]
    %v431 = vld [vmem:[%s2 + $0x7] sm:$0x1]
    %v432 = vsel %vm40, %v428, 0.0
    %433 = vadd.xlane.f32.xlu0 %v432
    %v434 = vpop.xlane.xlu0 %433
    %v435 = vsel %vm40, %v429, 0.0
    %436 = vadd.xlane.f32.xlu0 %v435
    %v437 = vpop.xlane.xlu0 %436
    %v438 = vrcp.pop 32.0
    %v439 = vmul.f32 32.0, %v438
    %v440 = vsub.f32 1.0, %v439
    %v441 = vmul.f32 %v438, %v440
    %v442 = vadd.f32 %v438, %v441
    %vm443 = vweird.f32 %v438
    %v444 = vsel %vm443, %v438, %v442
    %v445 = vmul.f32 %v434, %v444
    %v446 = vmul.f32 %v437, %v444
    %v447 = vsub.f32 %v428, %v445
    %v448 = vsub.f32 %v429, %v446
    %v449 = vmul.f32 %v447, %v447
    %v450 = vmul.f32 %v448, %v448
    %v451 = vsel %vm40, %v449, 0.0
    %452 = vadd.xlane.f32.xlu0 %v451
    %v453 = vpop.xlane.xlu0 %452
    %v454 = vsel %vm40, %v450, 0.0
    %455 = vadd.xlane.f32.xlu0 %v454
    %v456 = vpop.xlane.xlu0 %455
    %v457 = vmul.f32 %v453, %v444
    %v458 = vmul.f32 %v456, %v444
    %v459 = vadd.f32 %v457, 1e-05
    %v460 = vadd.f32 %v458, 1e-05
    %v461 = vrsqrt.pop %v459
    %v462 = vmul.f32 %v461, %v459
    %v463 = vmul.f32 %v462, %v461
    %v464 = vmul.f32 0.5, %v463
    %v465 = vsub.f32 1.5, %v464
    %v466 = vmul.f32 %v461, %v465
    %vm467 = vweird.f32 %v459
    %vm468 = vweird.f32 %v461
    %vm469 = vmor %vm467, %vm468
    %v470 = vsel %vm469, %v461, %v466
    %v471 = vrsqrt.pop %v460
    %v472 = vmul.f32 %v471, %v460
    %v473 = vmul.f32 %v472, %v471
    %v474 = vmul.f32 0.5, %v473
    %v475 = vsub.f32 1.5, %v474
    %v476 = vmul.f32 %v471, %v475
    %vm477 = vweird.f32 %v460
    %vm478 = vweird.f32 %v471
    %vm479 = vmor %vm477, %vm478
    %v480 = vsel %vm479, %v471, %v476
    %v481 = vmul.f32 %v447, %v470
    %v482 = vmul.f32 %v448, %v480
    %v483 = vperm.slane %v430, 0
    %v484 = vmul.f32 %v481, %v483
    %v485 = vmul.f32 %v482, %v483
    %v486 = vperm.slane %v431, 0
    %v487 = vadd.f32 %v484, %v486
    %v488 = vadd.f32 %v485, %v486
    %v489 = vpack.c.bf16 %v488, %v487
    %v490 = vld [vmem:[%s1 + $0x40] sm:$0xf]
    %v491 = vld [vmem:[%s1 + $0x44] sm:$0xf]
    %v492 = vld [vmem:[%s1 + $0x48] sm:$0xf]
    %v493 = vld [vmem:[%s1 + $0x4c] sm:$0xf]
    %v494 = vld [vmem:[%s2 + $0x4] sm:$0x1]
    %v495 = vperm.slane %v494, 0
    %v500 = vunpack.c.l.b16 %v490
    %v501 = vunpack.c.l.b16 %v491
    %v502 = vunpack.c.l.b16 %v492
    %v503 = vunpack.c.l.b16 %v493
    %v504 = vpack.c.b16 %v501, %v500
    %v505 = vpack.c.b16 %v503, %v502
    %v509 = vsel %vm40, %v489, 0
    %511 = vmatpush.bf16.msra.mxu0 0
    %512 = vmatpush.bf16.msra.mxu0 0
    %513 = vmatpush.bf16.msra.mxu0 0
    %514 = vmatpush.bf16.msra.mxu0 0
    %515 = vmatpush.bf16.msra.mxu0 0
    %516 = vmatpush.bf16.msra.mxu0 0
    %517 = vmatpush.bf16.msra.mxu0 %v505
    %518 = vmatpush.bf16.msra.mxu0 %v504
    %519 = vmatmul.bf16.gmra.mxu0 %v509
    %v520 = vpop.f32.mrf.mxu0
    %v521 = vadd.f32 %v495, %v520
    %v522 = vpop.f32.mrf.mxu0
    %v523 = vadd.f32 %v495, %v522
    %524 = vdwg.mxu0
    %v525 = vmax.f32 %v521, 0.0
    %v526 = vmax.f32 %v523, 0.0
    %v527 = vpack.c.bf16 %v526, %v525
    %v528 = vld [vmem:[%s1 + $0x50] sm:$0xf]
    %v529 = vld [vmem:[%s1 + $0x54] sm:$0xf]
    %v530 = vld [vmem:[%s1 + $0x58] sm:$0xf]
    %v531 = vld [vmem:[%s1 + $0x5c] sm:$0xf]
    %v532 = vld [vmem:[%s2 + $0x5] sm:$0x1]
    %v533 = vperm.slane %v532, 0
    %v538 = vunpack.c.l.b16 %v528
    %v539 = vunpack.c.l.b16 %v529
    %v540 = vunpack.c.l.b16 %v530
    %v541 = vunpack.c.l.b16 %v531
    %v542 = vpack.c.b16 %v539, %v538
    %v543 = vpack.c.b16 %v541, %v540
    %v547 = vsel %vm40, %v527, 0
    %549 = vmatpush.bf16.msra.mxu0 0
    %550 = vmatpush.bf16.msra.mxu0 0
    %551 = vmatpush.bf16.msra.mxu0 0
    %552 = vmatpush.bf16.msra.mxu0 0
    %553 = vmatpush.bf16.msra.mxu0 0
    %554 = vmatpush.bf16.msra.mxu0 0
    %555 = vmatpush.bf16.msra.mxu0 %v543
    %556 = vmatpush.bf16.msra.mxu0 %v542
    %557 = vmatmul.bf16.gmra.mxu0 %v547
    %v558 = vpop.f32.mrf.mxu0
    %v559 = vadd.f32 %v533, %v558
    %v560 = vpop.f32.mrf.mxu0
    %v561 = vadd.f32 %v533, %v560
    %562 = vdwg.mxu0
    %v563 = vadd.f32 %v559, %v487
    %v564 = vadd.f32 %v561, %v488
    %v565 = vld [vmem:[%s2 + $0x8] sm:$0x1]
    %v566 = vld [vmem:[%s2 + $0x9] sm:$0x1]
    %v567 = vsel %vm40, %v563, 0.0
    %568 = vadd.xlane.f32.xlu0 %v567
    %v569 = vpop.xlane.xlu0 %568
    %v570 = vsel %vm40, %v564, 0.0
    %571 = vadd.xlane.f32.xlu0 %v570
    %v572 = vpop.xlane.xlu0 %571
    %v573 = vmul.f32 %v569, %v444
    %v574 = vmul.f32 %v572, %v444
    %v575 = vsub.f32 %v563, %v573
    %v576 = vsub.f32 %v564, %v574
    %v577 = vmul.f32 %v575, %v575
    %v578 = vmul.f32 %v576, %v576
    %v579 = vsel %vm40, %v577, 0.0
    %580 = vadd.xlane.f32.xlu0 %v579
    %v581 = vpop.xlane.xlu0 %580
    %v582 = vsel %vm40, %v578, 0.0
    %583 = vadd.xlane.f32.xlu0 %v582
    %v584 = vpop.xlane.xlu0 %583
    %v585 = vmul.f32 %v581, %v444
    %v586 = vmul.f32 %v584, %v444
    %v587 = vadd.f32 %v585, 1e-05
    %v588 = vadd.f32 %v586, 1e-05
    %v589 = vrsqrt.pop %v587
    %v590 = vmul.f32 %v589, %v587
    %v591 = vmul.f32 %v590, %v589
    %v592 = vmul.f32 0.5, %v591
    %v593 = vsub.f32 1.5, %v592
    %v594 = vmul.f32 %v589, %v593
    %vm595 = vweird.f32 %v587
    %vm596 = vweird.f32 %v589
    %vm597 = vmor %vm595, %vm596
    %v598 = vsel %vm597, %v589, %v594
    %v599 = vrsqrt.pop %v588
    %v600 = vmul.f32 %v599, %v588
    %v601 = vmul.f32 %v600, %v599
    %v602 = vmul.f32 0.5, %v601
    %v603 = vsub.f32 1.5, %v602
    %v604 = vmul.f32 %v599, %v603
    %vm605 = vweird.f32 %v588
    %vm606 = vweird.f32 %v599
    %vm607 = vmor %vm605, %vm606
    %v608 = vsel %vm607, %v599, %v604
    %v609 = vmul.f32 %v575, %v598
    %v610 = vmul.f32 %v576, %v608
    %v611 = vperm.slane %v565, 0
    %v612 = vmul.f32 %v609, %v611
    %v613 = vmul.f32 %v610, %v611
    %v614 = vperm.slane %v566, 0
    %v615 = vadd.f32 %v612, %v614
    %v616 = vadd.f32 %v613, %v614
    %617 = vst.msk [vmem:[#allocation2] sm:$0xff] %vm40, %v615
    %618 = vst.msk [vmem:[#allocation2 + $0x8] sm:$0xff] %vm40, %v616
    // Predicated region
    $region18: #{tpu_custom_call.1} parent=1 // pred_check
      _
    $region19: #{tpu_custom_call.1} parent=1 // pred_check_branch
      %620 = sbr.rel (0) target = $region21
    $region20: #{tpu_custom_call.1} parent=1 // pred_region
      %622 = vsyncadd [#allocation3], 0
      %s623 = sshll.u32 [#allocation2], 4
      %s624 = int_to_ptr.vmem [resolvable:$true] %s623
      %s625 = sshll.u32 %s4, 4
      %s626 = int_to_ptr.hbm [resolvable:$true] %s625
      %631 = dma.vmem_to_hbm [thread:$0]  %s624, 256, %s626, [#allocation3], 128, 128, 8
    $region21: #{tpu_custom_call.1} parent=1 // pred_fallthru
      _
    // Predicated region
    $region22: #{tpu_custom_call.1} parent=1 // pred_check
      _
    $region23: #{tpu_custom_call.1} parent=1 // pred_check_branch
      %633 = sbr.rel (0) target = $region25
    $region24: #{tpu_custom_call.1} parent=1 // pred_region
      %635 = dma.done [#allocation3], 256
    $region25: #{tpu_custom_call.1} parent=1 // pred_fallthru
      _
    %636 = vsyncpa [#allocation3], 1

</llo_original>
